<compile_context>
chip_gen: v6e
topology: v6e:2x2x1
jax: 0.10.0
libtpu: 0.0.40
codegen_flags: <defaults>
</compile_context>

<pallas_src>
import jax
import jax.numpy as jnp
from jax.experimental import pallas as pl
from jax.experimental.pallas import tpu as pltpu

LANE = 128          # vreg lane width
SUBLANE_F32 = 8     # f32 sublane granule
SUBLANE_BF16 = 16   # bf16 packs 16 sublanes per vreg


def _round_up(x, m):
    return (x + m - 1) // m * m


def _vann_kernel(x_ref, w1_ref, b1_ref, w2_ref, b2_ref, w3_ref, b3_ref, o_ref):
    # In-kernel bf16 cast of the f32 activation tile (VALU slot has slack;
    # halves the activation HBM read vs. a wrapper-side cast pass).
    x = x_ref[...].astype(jnp.bfloat16)
    # Layer 1: dendrites + ReLU.  bf16 MXU operands, f32 accumulate/epilogue.
    h1 = jnp.dot(x, w1_ref[...], preferred_element_type=jnp.float32)
    h1 = jnp.maximum(h1 + b1_ref[...], 0.0)
    # Layer 2: somas + ReLU.
    h2 = jnp.dot(h1.astype(w2_ref.dtype), w2_ref[...],
                 preferred_element_type=jnp.float32)
    h2 = jnp.maximum(h2 + b2_ref[...], 0.0)
    # Layer 3: classifier (no activation).  N = num_out (<128, masked store).
    logits = jnp.dot(h2.astype(w3_ref.dtype), w3_ref[...],
                     preferred_element_type=jnp.float32)
    o_ref[...] = (logits + b3_ref[...]).astype(o_ref.dtype)


def prepare_params(params):
    """Zero-pad only the hidden dims (num_dendrites / num_somas) to 128 lanes
    and cast the matmul operands to bf16 once.  The feature dim (K of layer 1)
    and the output dim (N of layer 3) are left un-padded; their BlockSpecs use
    full-array blocks.  Hidden-dim padding is exact: padded hidden units see
    ReLU(0 + 0) = 0 and have zero outgoing weights."""
    def pad2(a, rows, cols):
        return jnp.pad(a, ((0, rows - a.shape[0]), (0, cols - a.shape[1])))

    w1, b1 = params["w1"], params["b1"]
    w2, b2 = params["w2"], params["b2"]
    w3, b3 = params["w3"], params["b3"]
    F = w1.shape[0]
    h1_pad = _round_up(w1.shape[1], LANE)
    h2_pad = _round_up(w2.shape[1], LANE)
    num_out = w3.shape[1]
    return {
        "w1": pad2(w1, F, h1_pad).astype(jnp.bfloat16),
        "b1": pad2(b1, 1, h1_pad),                      # bias/epilogue stays f32
        "w2": pad2(w2, h1_pad, h2_pad).astype(jnp.bfloat16),
        "b2": pad2(b2, 1, h2_pad),
        "w3": pad2(w3, h2_pad, num_out).astype(jnp.bfloat16),
        "b3": b3,                                       # (1, num_out), f32
        "num_out": num_out,
        "num_features": F,
    }


def vann_forward(x, padded, *, tb_max=1024, vmem_budget_bytes=32 << 20):
    """x: (B, H, W) float32.  padded: output of prepare_params."""
    B = x.shape[0]
    num_out = padded["num_out"]
    w1, b1 = padded["w1"], padded["b1"]
    w2, b2 = padded["w2"], padded["b2"]
    w3, b3 = padded["w3"], padded["b3"]

    # Flatten exactly like torch.flatten(x, start_dim=1).  No dtype cast here.
    x_flat = x.reshape(B, -1)
    F = x_flat.shape[1]
    assert F == padded["num_features"]

    # Only round the batch up to the 8-row f32 sublane granule (<= 7 extra
    # rows; a no-op for typical batch sizes).  No padding to the tile size:
    # the ragged last grid step reads OOB rows whose outputs are masked.
    B_al = _round_up(B, SUBLANE_F32)
    if B_al != B:
        x_flat = jnp.pad(x_flat, ((0, B_al - B), (0, 0)))

    # Bytes of weights/biases that stay resident in VMEM across the grid.
    resident = ((w1.size + w2.size + w3.size) * 2
                + (b1.size + b2.size + b3.size) * 4)

    def tile_bytes(t):
        # double-buffered f32 activation tile + double-buffered f32 logits tile
        return resident + 2 * t * F * 4 + 2 * t * num_out * 4

    # Largest batch tile (sublane-aligned) under the VMEM budget, capped so
    # there are >= 2 grid steps whenever possible (v7x megacore).
    tb = min(_round_up(tb_max, SUBLANE_BF16), B_al)
    if B_al > SUBLANE_BF16:
        tb = min(tb, _round_up(pl.cdiv(B_al, 2), SUBLANE_BF16))
    tb = max(_round_up(tb, SUBLANE_F32), SUBLANE_F32)
    while tb > SUBLANE_F32 and tile_bytes(tb) > vmem_budget_bytes:
        tb = max(_round_up(tb // 2, SUBLANE_F32), SUBLANE_F32)

    grid = (pl.cdiv(B_al, tb),)

    act_spec = pl.BlockSpec((tb, F), lambda i: (i, 0))
    out_spec = pl.BlockSpec((tb, num_out), lambda i: (i, 0))

    def resident_spec(arr):
        # Full-array block, constant index -> stays in VMEM for the whole grid.
        return pl.BlockSpec(arr.shape, lambda i: (0, 0))

    # Headroom-capped scoped-VMEM limit (48 MiB < v7x's 64 MiB physical VMEM).
    vmem_limit = min(max(int(tile_bytes(tb) * 1.5) + (4 << 20), 32 << 20), 48 << 20)

    out = pl.pallas_call(
        _vann_kernel,
        out_shape=jax.ShapeDtypeStruct((B_al, num_out), jnp.float32),
        grid_spec=pltpu.PrefetchScalarGridSpec(
            num_scalar_prefetch=0,
            grid=grid,
            in_specs=[
                act_spec,
                resident_spec(w1), resident_spec(b1),
                resident_spec(w2), resident_spec(b2),
                resident_spec(w3), resident_spec(b3),
            ],
            out_specs=out_spec,
        ),
        compiler_params=pltpu.CompilerParams(
            dimension_semantics=("parallel",),   # batch shards across v7x's 2 TCs
            vmem_limit_bytes=vmem_limit,
        ),
    )(x_flat, w1, b1, w2, b2, w3, b3)

    # Drop the (at most 7) sublane-alignment rows.
    return out[:B]


def init_params(key, image_size, num_dendrites, num_somas, num_out):
    f_in = image_size[0] * image_size[1]
    ks = jax.random.split(key, 6)

    def linear(kw, kb, fan_in, fan_out):
        # torch.nn.Linear-style uniform init; weights stored (in, out) so the
        # kernel computes y = x @ W + b directly.
        bound = 1.0 / (fan_in ** 0.5)
        w = jax.random.uniform(kw, (fan_in, fan_out), jnp.float32, -bound, bound)
        b = jax.random.uniform(kb, (1, fan_out), jnp.float32, -bound, bound)
        return w, b

    w1, b1 = linear(ks[0], ks[1], f_in, num_dendrites)
    w2, b2 = linear(ks[2], ks[3], num_dendrites, num_somas)
    w3, b3 = linear(ks[4], ks[5], num_somas, num_out)
    return {"w1": w1, "b1": b1, "w2": w2, "b2": b2, "w3": w3, "b3": b3}


if __name__ == "__main__":
    key = jax.random.PRNGKey(0)
    k_x, k_p = jax.random.split(key)

    image_size = (16, 16)
    num_dendrites = 32
    num_somas = 32
    num_out = 10
    batch = 2

    x = jax.random.normal(k_x, (batch, *image_size), dtype=jnp.float32)
    params = init_params(k_p, image_size, num_dendrites, num_somas, num_out)
    padded = prepare_params(params)

    logits = vann_forward(x, padded)
    logits = jax.block_until_ready(logits)
    assert logits.shape == (batch, num_out)

    # Reference 1: matched-precision (bf16 operands, f32 accumulate) — tight.
    xf = x.reshape(batch, -1).astype(jnp.bfloat16)
    h1 = jnp.maximum(
        jnp.dot(xf, params["w1"].astype(jnp.bfloat16),
                preferred_element_type=jnp.float32) + params["b1"], 0.0)
    h2 = jnp.maximum(
        jnp.dot(h1.astype(jnp.bfloat16), params["w2"].astype(jnp.bfloat16),
                preferred_element_type=jnp.float32) + params["b2"], 0.0)
    ref_bf16 = jnp.dot(h2.astype(jnp.bfloat16), params["w3"].astype(jnp.bfloat16),
                       preferred_element_type=jnp.float32) + params["b3"]
    assert jnp.allclose(logits, ref_bf16, atol=1e-2, rtol=1e-2)

    # Reference 2: pure f32 semantics of the original module — loose tolerance
    # (bf16 MXU operands introduce ~0.4% relative error per layer).
    xf32 = x.reshape(batch, -1)
    g1 = jnp.maximum(xf32 @ params["w1"] + params["b1"], 0.0)
    g2 = jnp.maximum(g1 @ params["w2"] + params["b2"], 0.0)
    ref_f32 = g2 @ params["w3"] + params["b3"]
    assert jnp.allclose(logits, ref_f32, atol=5e-2, rtol=5e-2)

    print("KERNEL_OK")
</pallas_src>

<mosaic_0001>
module attributes {stable_mosaic.version = 11 : i64} {
  func.func @_vann_kernel(%arg0: i32, %arg1: memref<8x256xf32, #tpu.memory_space<vmem>>, %arg2: memref<256x128xbf16, #tpu.memory_space<vmem>>, %arg3: memref<1x128xf32, #tpu.memory_space<vmem>>, %arg4: memref<128x128xbf16, #tpu.memory_space<vmem>>, %arg5: memref<1x128xf32, #tpu.memory_space<vmem>>, %arg6: memref<128x10xbf16, #tpu.memory_space<vmem>>, %arg7: memref<1x10xf32, #tpu.memory_space<vmem>>, %arg8: memref<8x10xf32, #tpu.memory_space<vmem>>) attributes {dimension_semantics = [#tpu.dimension_semantics<parallel>], iteration_bounds = array<i64: 1>, scalar_prefetch = 0 : i64, scratch_operands = 0 : i64, tpu.core_type = #tpu.core_type<tc>, window_params = [{transform_indices = @transform_0, window_bounds = array<i64: 8, 256>}, {pipeline_mode = #tpu.pipeline_mode<synchronous>, transform_indices = @transform_1, window_bounds = array<i64: 256, 128>}, {pipeline_mode = #tpu.pipeline_mode<synchronous>, transform_indices = @transform_2, window_bounds = array<i64: 1, 128>}, {pipeline_mode = #tpu.pipeline_mode<synchronous>, transform_indices = @transform_3, window_bounds = array<i64: 128, 128>}, {pipeline_mode = #tpu.pipeline_mode<synchronous>, transform_indices = @transform_4, window_bounds = array<i64: 1, 128>}, {pipeline_mode = #tpu.pipeline_mode<synchronous>, transform_indices = @transform_5, window_bounds = array<i64: 128, 10>}, {pipeline_mode = #tpu.pipeline_mode<synchronous>, transform_indices = @transform_6, window_bounds = array<i64: 1, 10>}, {transform_indices = @transform_7, window_bounds = array<i64: 8, 10>}]} {
    %c0 = arith.constant 0 : index
    %c0_0 = arith.constant 0 : index
    %0 = vector.load %arg1[%c0, %c0_0] : memref<8x256xf32, #tpu.memory_space<vmem>>, vector<8x256xf32>
    %1 = arith.truncf %0 : vector<8x256xf32> to vector<8x256xbf16>
    %c0_1 = arith.constant 0 : index
    %c0_2 = arith.constant 0 : index
    %2 = vector.load %arg2[%c0_1, %c0_2] : memref<256x128xbf16, #tpu.memory_space<vmem>>, vector<256x128xbf16>
    %cst = arith.constant dense<0.000000e+00> : vector<8x128xf32>
    %3 = tpu.matmul %1, %2, %cst {dimension_numbers = #tpu.dot_dimension_numbers<[1], [0], [0], [1], [0, 0, 1, 1], [], []>} : vector<8x256xbf16>, vector<256x128xbf16>, vector<8x128xf32> -> vector<8x128xf32>
    %c0_3 = arith.constant 0 : index
    %c0_4 = arith.constant 0 : index
    %4 = vector.load %arg3[%c0_3, %c0_4] : memref<1x128xf32, #tpu.memory_space<vmem>>, vector<1x128xf32>
    %5 = vector.broadcast %4 : vector<1x128xf32> to vector<8x128xf32>
    %6 = arith.addf %3, %5 : vector<8x128xf32>
    %cst_5 = arith.constant 0.000000e+00 : f32
    %7 = vector.broadcast %cst_5 : f32 to vector<8x128xf32>
    %8 = arith.maximumf %6, %7 : vector<8x128xf32>
    %9 = arith.truncf %8 : vector<8x128xf32> to vector<8x128xbf16>
    %c0_6 = arith.constant 0 : index
    %c0_7 = arith.constant 0 : index
    %10 = vector.load %arg4[%c0_6, %c0_7] : memref<128x128xbf16, #tpu.memory_space<vmem>>, vector<128x128xbf16>
    %cst_8 = arith.constant dense<0.000000e+00> : vector<8x128xf32>
    %11 = tpu.matmul %9, %10, %cst_8 {dimension_numbers = #tpu.dot_dimension_numbers<[1], [0], [0], [1], [0, 0, 1, 1], [], []>} : vector<8x128xbf16>, vector<128x128xbf16>, vector<8x128xf32> -> vector<8x128xf32>
    %c0_9 = arith.constant 0 : index
    %c0_10 = arith.constant 0 : index
    %12 = vector.load %arg5[%c0_9, %c0_10] : memref<1x128xf32, #tpu.memory_space<vmem>>, vector<1x128xf32>
    %13 = vector.broadcast %12 : vector<1x128xf32> to vector<8x128xf32>
    %14 = arith.addf %11, %13 : vector<8x128xf32>
    %cst_11 = arith.constant 0.000000e+00 : f32
    %15 = vector.broadcast %cst_11 : f32 to vector<8x128xf32>
    %16 = arith.maximumf %14, %15 : vector<8x128xf32>
    %17 = arith.truncf %16 : vector<8x128xf32> to vector<8x128xbf16>
    %c0_12 = arith.constant 0 : index
    %c0_13 = arith.constant 0 : index
    %18 = vector.load %arg6[%c0_12, %c0_13] : memref<128x10xbf16, #tpu.memory_space<vmem>>, vector<128x10xbf16>
    %cst_14 = arith.constant dense<0.000000e+00> : vector<8x10xf32>
    %19 = tpu.matmul %17, %18, %cst_14 {dimension_numbers = #tpu.dot_dimension_numbers<[1], [0], [0], [1], [0, 0, 1, 1], [], []>} : vector<8x128xbf16>, vector<128x10xbf16>, vector<8x10xf32> -> vector<8x10xf32>
    %c0_15 = arith.constant 0 : index
    %c0_16 = arith.constant 0 : index
    %20 = vector.load %arg7[%c0_15, %c0_16] : memref<1x10xf32, #tpu.memory_space<vmem>>, vector<1x10xf32>
    %21 = vector.broadcast %20 : vector<1x10xf32> to vector<8x10xf32>
    %22 = arith.addf %19, %21 : vector<8x10xf32>
    %c0_17 = arith.constant 0 : index
    %c0_18 = arith.constant 0 : index
    %23 = vector.load %arg8[%c0_17, %c0_18] : memref<8x10xf32, #tpu.memory_space<vmem>>, vector<8x10xf32>
    tpu.vector_store %arg8[%c0_17, %c0_18], %22 {strides = array<i32>} : memref<8x10xf32, #tpu.memory_space<vmem>>, vector<8x10xf32>,
    return
  }
  func.func @transform_0(%arg0: i32) -> (i32, i32) {
    %c0_i32 = arith.constant 0 : i32
    %c0_i32_0 = arith.constant 0 : i32
    return %arg0, %c0_i32 : i32, i32
  }
  func.func @transform_1(%arg0: i32) -> (i32, i32) {
    %c0_i32 = arith.constant 0 : i32
    %c0_i32_0 = arith.constant 0 : i32
    %c0_i32_1 = arith.constant 0 : i32
    return %c0_i32, %c0_i32_0 : i32, i32
  }
  func.func @transform_2(%arg0: i32) -> (i32, i32) {
    %c0_i32 = arith.constant 0 : i32
    %c0_i32_0 = arith.constant 0 : i32
    %c0_i32_1 = arith.constant 0 : i32
    return %c0_i32, %c0_i32_0 : i32, i32
  }
  func.func @transform_3(%arg0: i32) -> (i32, i32) {
    %c0_i32 = arith.constant 0 : i32
    %c0_i32_0 = arith.constant 0 : i32
    %c0_i32_1 = arith.constant 0 : i32
    return %c0_i32, %c0_i32_0 : i32, i32
  }
  func.func @transform_4(%arg0: i32) -> (i32, i32) {
    %c0_i32 = arith.constant 0 : i32
    %c0_i32_0 = arith.constant 0 : i32
    %c0_i32_1 = arith.constant 0 : i32
    return %c0_i32, %c0_i32_0 : i32, i32
  }
  func.func @transform_5(%arg0: i32) -> (i32, i32) {
    %c0_i32 = arith.constant 0 : i32
    %c0_i32_0 = arith.constant 0 : i32
    %c0_i32_1 = arith.constant 0 : i32
    return %c0_i32, %c0_i32_0 : i32, i32
  }
  func.func @transform_6(%arg0: i32) -> (i32, i32) {
    %c0_i32 = arith.constant 0 : i32
    %c0_i32_0 = arith.constant 0 : i32
    %c0_i32_1 = arith.constant 0 : i32
    return %c0_i32, %c0_i32_0 : i32, i32
  }
  func.func @transform_7(%arg0: i32) -> (i32, i32) {
    %c0_i32 = arith.constant 0 : i32
    %c0_i32_0 = arith.constant 0 : i32
    return %arg0, %c0_i32 : i32, i32
  }
}

</mosaic_0001>

<llo_original>
// kernel: tpu_custom_call.1
$region0: #{tpu_custom_call.1}
  #allocation0 [shape = 'u32[]', space=smem, size = 0x4, offset = 0x4, fixed_abs, tag = 'smem constant byte address 0x4 - core index']
  #allocation1 [shape = 'u32[144,128]{1,0:T(1,128)}', space=vmem, size = 0x12000, scoped, tag = 'internal scratch']
  %s0 = inlined_call_operand.hbm [shape: f32[8,256], index: 0, kind: input, shape index: {}]
  %s1 = inlined_call_operand.hbm [shape: bf16[256,128], index: 1, kind: input, shape index: {}]
  %s2 = inlined_call_operand.vmem [shape: f32[1,128], index: 2, kind: input, shape index: {}]
  %s3 = inlined_call_operand.vmem [shape: bf16[128,128], index: 3, kind: input, shape index: {}]
  %s4 = inlined_call_operand.vmem [shape: f32[1,128], index: 4, kind: input, shape index: {}]
  %s5 = inlined_call_operand.vmem [shape: bf16[128,10], index: 5, kind: input, shape index: {}]
  %s6 = inlined_call_operand.vmem [shape: f32[1,10], index: 6, kind: input, shape index: {}]
  %s7 = inlined_call_operand.hbm [shape: f32[8,10], index: 7, kind: output, shape index: {}]
  %s8 = sld [smem:[#allocation0]]
  $region46: #{tpu_custom_call.1} parent=0
    _
  %s10 = ssub.s32 1, %s8
  %s11 = scalar_select 0, %s10, %s8
  $region1: #{tpu_custom_call.1} parent=0
    #allocation2 [shape = 'u8[8192]{0}', space=vmem, size = 0x2000, scoped, tag = 'input window, operand 0, single buffered']
    #allocation3 [shape = 's32[1]{0}', space=sflag, size = 0x4, scoped, tag = 'scoped memory for tpu_custom_call.1']
    #allocation4 [shape = 's32[1]{0}', space=sflag, size = 0x4, scoped, tag = 'scoped memory for tpu_custom_call.1']
    #allocation5 [shape = 'u8[65536]{0}', space=vmem, size = 0x10000, scoped, tag = 'input window, operand 1, single buffered']
    #allocation6 [shape = 's32[1]{0}', space=sflag, size = 0x4, scoped, tag = 'scoped memory for tpu_custom_call.1']
    #allocation7 [shape = 'u8[4096]{0}', space=vmem, size = 0x1000, scoped, tag = 'output window, operand 0, single buffered']
    %12 = vsyncpa [#allocation3], 0
    %13 = vsyncpa [#allocation6], 0
    %14 = vsyncpa [#allocation4], 0
    // Predicated region
    $region2: #{tpu_custom_call.1} parent=1 // pred_check
      _
    $region3: #{tpu_custom_call.1} parent=1 // pred_check_branch
      %16 = sbr.rel (0) target = $region5
    $region4: #{tpu_custom_call.1} parent=1 // pred_region
      %s18 = ssub.s32 256, 256
      %19 = vsyncadd [#allocation3], %s18
      %s21 = sshll.u32 [#allocation2], 4
      %s22 = int_to_ptr.vmem [resolvable:$true] %s21
      %24 = dma.hbm_to_vmem [thread:$0]  %s0, 256, %s22, [#allocation3]
    $region5: #{tpu_custom_call.1} parent=1 // pred_fallthru
      _
    // Predicated region
    $region6: #{tpu_custom_call.1} parent=1 // pred_check
      _
    $region7: #{tpu_custom_call.1} parent=1 // pred_check_branch
      %26 = sbr.rel (0) target = $region9
    $region8: #{tpu_custom_call.1} parent=1 // pred_region
      %s28 = ssub.s32 2048, 2048
      %29 = vsyncadd [#allocation6], %s28
      %s30 = sshll.u32 [#allocation5], 4
      %s31 = int_to_ptr.vmem [resolvable:$true] %s30
      %36 = dma.hbm_to_vmem [thread:$0]  %s1, 2048, %s31, [#allocation6], 64, 64, 4
    $region9: #{tpu_custom_call.1} parent=1 // pred_fallthru
      _
    // Predicated region
    $region10: #{tpu_custom_call.1} parent=1 // pred_check
      _
    $region11: #{tpu_custom_call.1} parent=1 // pred_check_branch
      %38 = sbr.rel (0) target = $region13
    $region12: #{tpu_custom_call.1} parent=1 // pred_region
      _
    $region13: #{tpu_custom_call.1} parent=1 // pred_fallthru
      _
    // Predicated region
    $region14: #{tpu_custom_call.1} parent=1 // pred_check
      _
    $region15: #{tpu_custom_call.1} parent=1 // pred_check_branch
      %40 = sbr.rel (0) target = $region17
    $region16: #{tpu_custom_call.1} parent=1 // pred_region
      _
    $region17: #{tpu_custom_call.1} parent=1 // pred_fallthru
      _
    // Predicated region
    $region18: #{tpu_custom_call.1} parent=1 // pred_check
      _
    $region19: #{tpu_custom_call.1} parent=1 // pred_check_branch
      %42 = sbr.rel (0) target = $region21
    $region20: #{tpu_custom_call.1} parent=1 // pred_region
      _
    $region21: #{tpu_custom_call.1} parent=1 // pred_fallthru
      _
    // Predicated region
    $region22: #{tpu_custom_call.1} parent=1 // pred_check
      _
    $region23: #{tpu_custom_call.1} parent=1 // pred_check_branch
      %44 = sbr.rel (0) target = $region25
    $region24: #{tpu_custom_call.1} parent=1 // pred_region
      _
    $region25: #{tpu_custom_call.1} parent=1 // pred_fallthru
      _
    // Predicated region
    $region26: #{tpu_custom_call.1} parent=1 // pred_check
      _
    $region27: #{tpu_custom_call.1} parent=1 // pred_check_branch
      %46 = sbr.rel (0) target = $region29
    $region28: #{tpu_custom_call.1} parent=1 // pred_region
      _
    $region29: #{tpu_custom_call.1} parent=1 // pred_fallthru
      _
    // Predicated region
    $region30: #{tpu_custom_call.1} parent=1 // pred_check
      _
    $region31: #{tpu_custom_call.1} parent=1 // pred_check_branch
      %48 = sbr.rel (0) target = $region33
    $region32: #{tpu_custom_call.1} parent=1 // pred_region
      %49 = dma.done [#allocation3], 256
    $region33: #{tpu_custom_call.1} parent=1 // pred_fallthru
      _
    // Predicated region
    $region34: #{tpu_custom_call.1} parent=1 // pred_check
      _
    $region35: #{tpu_custom_call.1} parent=1 // pred_check_branch
      %51 = sbr.rel (0) target = $region37
    $region36: #{tpu_custom_call.1} parent=1 // pred_region
      %52 = dma.done [#allocation6], 2048
    $region37: #{tpu_custom_call.1} parent=1 // pred_fallthru
      _
    %v54 = vld [vmem:[#allocation2] sm:$0xff]
    %v55 = vld [vmem:[#allocation2 + $0x8] sm:$0xff]
    %v56 = vpack.c.bf16 %v54, %v54
    %v57 = vpack.c.bf16 %v55, %v55
    %v58 = vld [vmem:[#allocation5] sm:$0xf]
    %v59 = vld [vmem:[#allocation5 + $0x4] sm:$0xf]
    %v60 = vld [vmem:[#allocation5 + $0x8] sm:$0xf]
    %v61 = vld [vmem:[#allocation5 + $0xc] sm:$0xf]
    %v62 = vld [vmem:[#allocation5 + $0x10] sm:$0xf]
    %v63 = vld [vmem:[#allocation5 + $0x14] sm:$0xf]
    %v64 = vld [vmem:[#allocation5 + $0x18] sm:$0xf]
    %v65 = vld [vmem:[#allocation5 + $0x1c] sm:$0xf]
    %v66 = vld [vmem:[#allocation5 + $0x20] sm:$0xf]
    %v67 = vld [vmem:[#allocation5 + $0x24] sm:$0xf]
    %v68 = vld [vmem:[#allocation5 + $0x28] sm:$0xf]
    %v69 = vld [vmem:[#allocation5 + $0x2c] sm:$0xf]
    %v70 = vld [vmem:[#allocation5 + $0x30] sm:$0xf]
    %v71 = vld [vmem:[#allocation5 + $0x34] sm:$0xf]
    %v72 = vld [vmem:[#allocation5 + $0x38] sm:$0xf]
    %v73 = vld [vmem:[#allocation5 + $0x3c] sm:$0xf]
    %v74 = vld [vmem:[#allocation5 + $0x40] sm:$0xf]
    %v75 = vld [vmem:[#allocation5 + $0x44] sm:$0xf]
    %v76 = vld [vmem:[#allocation5 + $0x48] sm:$0xf]
    %v77 = vld [vmem:[#allocation5 + $0x4c] sm:$0xf]
    %v78 = vld [vmem:[#allocation5 + $0x50] sm:$0xf]
    %v79 = vld [vmem:[#allocation5 + $0x54] sm:$0xf]
    %v80 = vld [vmem:[#allocation5 + $0x58] sm:$0xf]
    %v81 = vld [vmem:[#allocation5 + $0x5c] sm:$0xf]
    %v82 = vld [vmem:[#allocation5 + $0x60] sm:$0xf]
    %v83 = vld [vmem:[#allocation5 + $0x64] sm:$0xf]
    %v84 = vld [vmem:[#allocation5 + $0x68] sm:$0xf]
    %v85 = vld [vmem:[#allocation5 + $0x6c] sm:$0xf]
    %v86 = vld [vmem:[#allocation5 + $0x70] sm:$0xf]
    %v87 = vld [vmem:[#allocation5 + $0x74] sm:$0xf]
    %v88 = vld [vmem:[#allocation5 + $0x78] sm:$0xf]
    %v89 = vld [vmem:[#allocation5 + $0x7c] sm:$0xf]
    %v90 = vld [vmem:[%s2] sm:$0x1]
    %v92 = vlaneseq
    %v93 = vshrl.u32 %v92, 7
    %v94 = vsub.s32 0, %v93
    %v95 = vrot.slane %v90, %v94
    %v129 = vunpack.c.l.b16 %v58
    %v130 = vunpack.c.l.b16 %v59
    %v131 = vunpack.c.l.b16 %v60
    %v132 = vunpack.c.l.b16 %v61
    %v133 = vunpack.c.l.b16 %v62
    %v134 = vunpack.c.l.b16 %v63
    %v135 = vunpack.c.l.b16 %v64
    %v136 = vunpack.c.l.b16 %v65
    %v137 = vunpack.c.l.b16 %v66
    %v138 = vunpack.c.l.b16 %v67
    %v139 = vunpack.c.l.b16 %v68
    %v140 = vunpack.c.l.b16 %v69
    %v141 = vunpack.c.l.b16 %v70
    %v142 = vunpack.c.l.b16 %v71
    %v143 = vunpack.c.l.b16 %v72
    %v144 = vunpack.c.l.b16 %v73
    %v145 = vunpack.c.l.b16 %v74
    %v146 = vunpack.c.l.b16 %v75
    %v147 = vunpack.c.l.b16 %v76
    %v148 = vunpack.c.l.b16 %v77
    %v149 = vunpack.c.l.b16 %v78
    %v150 = vunpack.c.l.b16 %v79
    %v151 = vunpack.c.l.b16 %v80
    %v152 = vunpack.c.l.b16 %v81
    %v153 = vunpack.c.l.b16 %v82
    %v154 = vunpack.c.l.b16 %v83
    %v155 = vunpack.c.l.b16 %v84
    %v156 = vunpack.c.l.b16 %v85
    %v157 = vunpack.c.l.b16 %v86
    %v158 = vunpack.c.l.b16 %v87
    %v159 = vunpack.c.l.b16 %v88
    %v160 = vunpack.c.l.b16 %v89
    %v161 = vpack.c.b16 %v130, %v129
    %v162 = vpack.c.b16 %v132, %v131
    %v163 = vpack.c.b16 %v134, %v133
    %v164 = vpack.c.b16 %v136, %v135
    %v165 = vpack.c.b16 %v138, %v137
    %v166 = vpack.c.b16 %v140, %v139
    %v167 = vpack.c.b16 %v142, %v141
    %v168 = vpack.c.b16 %v144, %v143
    %v169 = vpack.c.b16 %v146, %v145
    %v170 = vpack.c.b16 %v148, %v147
    %v171 = vpack.c.b16 %v150, %v149
    %v172 = vpack.c.b16 %v152, %v151
    %v173 = vpack.c.b16 %v154, %v153
    %v174 = vpack.c.b16 %v156, %v155
    %v175 = vpack.c.b16 %v158, %v157
    %v176 = vpack.c.b16 %v160, %v159
    %193 = vmatprep.subr.bf16.mxu0 0
    %194 = vmatpush1.bf16.msra.mxu0 %v168
    %195 = vmatprep.subr.bf16.mxu0 0
    %196 = vmatpush1.bf16.msra.mxu0 %v167
    %197 = vmatprep.subr.bf16.mxu0 0
    %198 = vmatpush1.bf16.msra.mxu0 %v166
    %199 = vmatprep.subr.bf16.mxu0 0
    %200 = vmatpush1.bf16.msra.mxu0 %v165
    %201 = vmatprep.subr.bf16.mxu0 0
    %202 = vmatpush1.bf16.msra.mxu0 %v164
    %203 = vmatprep.subr.bf16.mxu0 0
    %204 = vmatpush1.bf16.msra.mxu0 %v163
    %205 = vmatprep.subr.bf16.mxu0 0
    %206 = vmatpush1.bf16.msra.mxu0 %v162
    %207 = vmatprep.subr.bf16.mxu0 0
    %208 = vmatpush1.bf16.msra.mxu0 %v161
    %209 = vmatprep.subr.bf16.mxu0 0
    %210 = vmatpush2.bf16.msra.mxu0 %v176
    %211 = vmatprep.subr.bf16.mxu0 0
    %212 = vmatpush2.bf16.msra.mxu0 %v175
    %213 = vmatprep.subr.bf16.mxu0 0
    %214 = vmatpush2.bf16.msra.mxu0 %v174
    %215 = vmatprep.subr.bf16.mxu0 0
    %216 = vmatpush2.bf16.msra.mxu0 %v173
    %217 = vmatprep.subr.bf16.mxu0 0
    %218 = vmatpush2.bf16.msra.mxu0 %v172
    %219 = vmatprep.subr.bf16.mxu0 0
    %220 = vmatpush2.bf16.msra.mxu0 %v171
    %221 = vmatprep.subr.bf16.mxu0 0
    %222 = vmatpush2.bf16.msra.mxu0 %v170
    %223 = vmatprep.subr.bf16.mxu0 0
    %224 = vmatpush2.bf16.msra.mxu0 %v169
    %225 = vmatprep.mubr.bf16.mxu0 %v57
    %226 = vmatmul.mubr.bf16.gmra.mxu0 %v56
    %v227 = vpop.f32.mrf.mxu0
    %v228 = vadd.f32 %v95, %v227
    %v229 = vpop.f32.mrf.mxu0
    %v230 = vpop.f32.mrf.mxu0
    %v231 = vpop.f32.mrf.mxu0
    %232 = vdwg.mxu0
    %v233 = vmax.f32 %v228, 0.0
    %v234 = vpack.c.bf16 %v233, %v233
    %v235 = vld [vmem:[%s3] sm:$0xf]
    %v236 = vld [vmem:[%s3 + $0x4] sm:$0xf]
    %v237 = vld [vmem:[%s3 + $0x8] sm:$0xf]
    %v238 = vld [vmem:[%s3 + $0xc] sm:$0xf]
    %v239 = vld [vmem:[%s3 + $0x10] sm:$0xf]
    %v240 = vld [vmem:[%s3 + $0x14] sm:$0xf]
    %v241 = vld [vmem:[%s3 + $0x18] sm:$0xf]
    %v242 = vld [vmem:[%s3 + $0x1c] sm:$0xf]
    %v243 = vld [vmem:[%s3 + $0x20] sm:$0xf]
    %v244 = vld [vmem:[%s3 + $0x24] sm:$0xf]
    %v245 = vld [vmem:[%s3 + $0x28] sm:$0xf]
    %v246 = vld [vmem:[%s3 + $0x2c] sm:$0xf]
    %v247 = vld [vmem:[%s3 + $0x30] sm:$0xf]
    %v248 = vld [vmem:[%s3 + $0x34] sm:$0xf]
    %v249 = vld [vmem:[%s3 + $0x38] sm:$0xf]
    %v250 = vld [vmem:[%s3 + $0x3c] sm:$0xf]
    %v251 = vld [vmem:[%s4] sm:$0x1]
    %v253 = vlaneseq
    %v254 = vshrl.u32 %v253, 7
    %v255 = vsub.s32 0, %v254
    %v256 = vrot.slane %v251, %v255
    %v274 = vunpack.c.l.b16 %v235
    %v275 = vunpack.c.l.b16 %v236
    %v276 = vunpack.c.l.b16 %v237
    %v277 = vunpack.c.l.b16 %v238
    %v278 = vunpack.c.l.b16 %v239
    %v279 = vunpack.c.l.b16 %v240
    %v280 = vunpack.c.l.b16 %v241
    %v281 = vunpack.c.l.b16 %v242
    %v282 = vunpack.c.l.b16 %v243
    %v283 = vunpack.c.l.b16 %v244
    %v284 = vunpack.c.l.b16 %v245
    %v285 = vunpack.c.l.b16 %v246
    %v286 = vunpack.c.l.b16 %v247
    %v287 = vunpack.c.l.b16 %v248
    %v288 = vunpack.c.l.b16 %v249
    %v289 = vunpack.c.l.b16 %v250
    %v290 = vpack.c.b16 %v275, %v274
    %v291 = vpack.c.b16 %v277, %v276
    %v292 = vpack.c.b16 %v279, %v278
    %v293 = vpack.c.b16 %v281, %v280
    %v294 = vpack.c.b16 %v283, %v282
    %v295 = vpack.c.b16 %v285, %v284
    %v296 = vpack.c.b16 %v287, %v286
    %v297 = vpack.c.b16 %v289, %v288
    %306 = vmatprep.subr.bf16.mxu0 0
    %307 = vmatpush1.bf16.msra.mxu0 %v297
    %308 = vmatprep.subr.bf16.mxu0 0
    %309 = vmatpush1.bf16.msra.mxu0 %v296
    %310 = vmatprep.subr.bf16.mxu0 0
    %311 = vmatpush1.bf16.msra.mxu0 %v295
    %312 = vmatprep.subr.bf16.mxu0 0
    %313 = vmatpush1.bf16.msra.mxu0 %v294
    %314 = vmatprep.subr.bf16.mxu0 0
    %315 = vmatpush1.bf16.msra.mxu0 %v293
    %316 = vmatprep.subr.bf16.mxu0 0
    %317 = vmatpush1.bf16.msra.mxu0 %v292
    %318 = vmatprep.subr.bf16.mxu0 0
    %319 = vmatpush1.bf16.msra.mxu0 %v291
    %320 = vmatprep.subr.bf16.mxu0 0
    %321 = vmatpush1.bf16.msra.mxu0 %v290
    %322 = vmatprep.subr.bf16.mxu0 0
    %323 = vmatpush2.bf16.msra.mxu0 0
    %324 = vmatprep.subr.bf16.mxu0 0
    %325 = vmatpush2.bf16.msra.mxu0 0
    %326 = vmatprep.subr.bf16.mxu0 0
    %327 = vmatpush2.bf16.msra.mxu0 0
    %328 = vmatprep.subr.bf16.mxu0 0
    %329 = vmatpush2.bf16.msra.mxu0 0
    %330 = vmatprep.subr.bf16.mxu0 0
    %331 = vmatpush2.bf16.msra.mxu0 0
    %332 = vmatprep.subr.bf16.mxu0 0
    %333 = vmatpush2.bf16.msra.mxu0 0
    %334 = vmatprep.subr.bf16.mxu0 0
    %335 = vmatpush2.bf16.msra.mxu0 0
    %336 = vmatprep.subr.bf16.mxu0 0
    %337 = vmatpush2.bf16.msra.mxu0 0
    %338 = vmatprep.mubr.bf16.mxu0 0
    %339 = vmatmul.mubr.bf16.gmra.mxu0 %v234
    %v340 = vpop.f32.mrf.mxu0
    %v341 = vadd.f32 %v256, %v340
    %v342 = vpop.f32.mrf.mxu0
    %v343 = vpop.f32.mrf.mxu0
    %v344 = vpop.f32.mrf.mxu0
    %345 = vdwg.mxu0
    %v346 = vmax.f32 %v341, 0.0
    %v347 = vpack.c.bf16 %v346, %v346
    %v348 = vld [vmem:[%s5] sm:$0xf]
    %v349 = vld [vmem:[%s5 + $0x4] sm:$0xf]
    %v350 = vld [vmem:[%s5 + $0x8] sm:$0xf]
    %v351 = vld [vmem:[%s5 + $0xc] sm:$0xf]
    %v352 = vld [vmem:[%s5 + $0x10] sm:$0xf]
    %v353 = vld [vmem:[%s5 + $0x14] sm:$0xf]
    %v354 = vld [vmem:[%s5 + $0x18] sm:$0xf]
    %v355 = vld [vmem:[%s5 + $0x1c] sm:$0xf]
    %v356 = vld [vmem:[%s5 + $0x20] sm:$0xf]
    %v357 = vld [vmem:[%s5 + $0x24] sm:$0xf]
    %v358 = vld [vmem:[%s5 + $0x28] sm:$0xf]
    %v359 = vld [vmem:[%s5 + $0x2c] sm:$0xf]
    %v360 = vld [vmem:[%s5 + $0x30] sm:$0xf]
    %v361 = vld [vmem:[%s5 + $0x34] sm:$0xf]
    %v362 = vld [vmem:[%s5 + $0x38] sm:$0xf]
    %v363 = vld [vmem:[%s5 + $0x3c] sm:$0xf]
    %v364 = vld [vmem:[%s6] sm:$0x1]
    %v366 = vlaneseq
    %v367 = vshrl.u32 %v366, 7
    %v368 = vsub.s32 0, %v367
    %v369 = vrot.slane %v364, %v368
    %v387 = vunpack.c.l.b16 %v348
    %v388 = vunpack.c.l.b16 %v349
    %v389 = vunpack.c.l.b16 %v350
    %v390 = vunpack.c.l.b16 %v351
    %v391 = vunpack.c.l.b16 %v352
    %v392 = vunpack.c.l.b16 %v353
    %v393 = vunpack.c.l.b16 %v354
    %v394 = vunpack.c.l.b16 %v355
    %v395 = vunpack.c.l.b16 %v356
    %v396 = vunpack.c.l.b16 %v357
    %v397 = vunpack.c.l.b16 %v358
    %v398 = vunpack.c.l.b16 %v359
    %v399 = vunpack.c.l.b16 %v360
    %v400 = vunpack.c.l.b16 %v361
    %v401 = vunpack.c.l.b16 %v362
    %v402 = vunpack.c.l.b16 %v363
    %v403 = vpack.c.b16 %v388, %v387
    %v404 = vpack.c.b16 %v390, %v389
    %v405 = vpack.c.b16 %v392, %v391
    %v406 = vpack.c.b16 %v394, %v393
    %v407 = vpack.c.b16 %v396, %v395
    %v408 = vpack.c.b16 %v398, %v397
    %v409 = vpack.c.b16 %v400, %v399
    %v410 = vpack.c.b16 %v402, %v401
    %419 = vmatprep.subr.bf16.mxu0 0
    %420 = vmatpush1.bf16.msra.mxu0 %v410
    %421 = vmatprep.subr.bf16.mxu0 0
    %422 = vmatpush1.bf16.msra.mxu0 %v409
    %423 = vmatprep.subr.bf16.mxu0 0
    %424 = vmatpush1.bf16.msra.mxu0 %v408
    %425 = vmatprep.subr.bf16.mxu0 0
    %426 = vmatpush1.bf16.msra.mxu0 %v407
    %427 = vmatprep.subr.bf16.mxu0 0
    %428 = vmatpush1.bf16.msra.mxu0 %v406
    %429 = vmatprep.subr.bf16.mxu0 0
    %430 = vmatpush1.bf16.msra.mxu0 %v405
    %431 = vmatprep.subr.bf16.mxu0 0
    %432 = vmatpush1.bf16.msra.mxu0 %v404
    %433 = vmatprep.subr.bf16.mxu0 0
    %434 = vmatpush1.bf16.msra.mxu0 %v403
    %435 = vmatprep.subr.bf16.mxu0 0
    %436 = vmatpush2.bf16.msra.mxu0 0
    %437 = vmatprep.subr.bf16.mxu0 0
    %438 = vmatpush2.bf16.msra.mxu0 0
    %439 = vmatprep.subr.bf16.mxu0 0
    %440 = vmatpush2.bf16.msra.mxu0 0
    %441 = vmatprep.subr.bf16.mxu0 0
    %442 = vmatpush2.bf16.msra.mxu0 0
    %443 = vmatprep.subr.bf16.mxu0 0
    %444 = vmatpush2.bf16.msra.mxu0 0
    %445 = vmatprep.subr.bf16.mxu0 0
    %446 = vmatpush2.bf16.msra.mxu0 0
    %447 = vmatprep.subr.bf16.mxu0 0
    %448 = vmatpush2.bf16.msra.mxu0 0
    %449 = vmatprep.subr.bf16.mxu0 0
    %450 = vmatpush2.bf16.msra.mxu0 0
    %451 = vmatprep.mubr.bf16.mxu0 0
    %452 = vmatmul.mubr.bf16.gmra.mxu0 %v347
    %v453 = vpop.f32.mrf.mxu0
    %v454 = vadd.f32 %v369, %v453
    %v455 = vpop.f32.mrf.mxu0
    %v456 = vpop.f32.mrf.mxu0
    %v457 = vpop.f32.mrf.mxu0
    %458 = vdwg.mxu0
    %vm459 = vcmask 80896
    %460 = vst.msk [vmem:[#allocation7] sm:$0xff] %vm459, %v454
    // Predicated region
    $region38: #{tpu_custom_call.1} parent=1 // pred_check
      _
    $region39: #{tpu_custom_call.1} parent=1 // pred_check_branch
      %462 = sbr.rel (0) target = $region41
    $region40: #{tpu_custom_call.1} parent=1 // pred_region
      %s464 = ssub.s32 128, 128
      %465 = vsyncadd [#allocation4], %s464
      %s467 = sshll.u32 [#allocation7], 4
      %s468 = int_to_ptr.vmem [resolvable:$true] %s467
      %470 = dma.vmem_to_hbm [thread:$0]  %s468, 128, %s7, [#allocation4]
    $region41: #{tpu_custom_call.1} parent=1 // pred_fallthru
      _
    // Predicated region
    $region42: #{tpu_custom_call.1} parent=1 // pred_check
      _
    $region43: #{tpu_custom_call.1} parent=1 // pred_check_branch
      %472 = sbr.rel (0) target = $region45
    $region44: #{tpu_custom_call.1} parent=1 // pred_region
      %473 = dma.done [#allocation4], 128
    $region45: #{tpu_custom_call.1} parent=1 // pred_fallthru
      _
    %474 = vsyncpa [#allocation3], 1
    %475 = vsyncpa [#allocation6], 1
    %476 = vsyncpa [#allocation4], 1

</llo_original>
